<compile_context>
chip_gen: v7x
topology: tpu7x:2x2x1
jax: 0.10.0
libtpu: 0.0.40
codegen_flags: <defaults>
</compile_context>

<pallas_src>
import functools
import math

import jax
import jax.numpy as jnp
from jax.experimental import pallas as pl
from jax.experimental.pallas import tpu as pltpu


def _gru_cell_kernel(xh_ref, h_ref, w_ref, b_ref, o_ref, *, H, Hp):
    """One batch tile of the GRU cell.

    xh_ref: (TB, I+H)   bf16   [x | h_prev]   (MXU operand)
    h_ref:  (TB, H)     f32    h_prev (for the final combine, kept in f32)
    w_ref:  (I+H, 4*Hp) bf16   packed [z | r | n | hh_n] column blocks
    b_ref:  (1, 4*Hp)   f32    packed [b_z | b_r | b_n | b_n] (zero padded)
    o_ref:  (TB, H)     f32
    """
    # Single MXU push, f32 accumulation, bias broadcast-add on aligned lanes.
    gates = jnp.dot(xh_ref[...], w_ref[...], preferred_element_type=jnp.float32)
    gates = gates + b_ref[...]                      # (TB, 4*Hp)

    # Gate blocks start on 128-lane-aligned offsets (0, Hp, 2Hp, 3Hp).
    z = jax.nn.sigmoid(gates[:, 0 * Hp:0 * Hp + H])
    r = jax.nn.sigmoid(gates[:, 1 * Hp:1 * Hp + H])
    n_pre = gates[:, 2 * Hp:2 * Hp + H]             # x@Wn^T + b_n + h@Whn^T
    hh_n = gates[:, 3 * Hp:3 * Hp + H]              # h@Whn^T + b_n

    n = jnp.tanh(n_pre + r * hh_n)
    h = h_ref[...]
    o_ref[...] = (n + z * (h - n)).astype(o_ref.dtype)   # == (1-z)*n + z*h


def prepare_gru_params(W_ih, W_hh, bias, mxu_dtype=jnp.bfloat16):
    """One-time parameter prep: transpose, pack, lane-pad, cast to MXU dtype."""
    three_h, input_size = W_ih.shape
    H = three_h // 3
    assert W_hh.shape == (3 * H, H)
    assert bias.shape == (3 * H,)

    Hp = ((H + 127) // 128) * 128                   # lane-aligned gate block width

    wih_t = W_ih.T                                  # (I, 3H)
    whh_t = W_hh.T                                  # (H, 3H)

    def pad_cols(w):                                # (rows, H) -> (rows, Hp)
        return jnp.pad(w, ((0, 0), (0, Hp - H)))

    blocks = []
    for g in range(3):                              # [z | r | n]
        blk = jnp.concatenate(
            [wih_t[:, g * H:(g + 1) * H], whh_t[:, g * H:(g + 1) * H]], axis=0)
        blocks.append(pad_cols(blk))
    # 4th block: zeros for the x rows, W_hh n-chunk for the h rows -> h @ W_hh_n^T
    blk_hh_n = jnp.concatenate(
        [jnp.zeros((input_size, H), W_hh.dtype), whh_t[:, 2 * H:3 * H]], axis=0)
    blocks.append(pad_cols(blk_hh_n))
    w_packed = jnp.concatenate(blocks, axis=1).astype(mxu_dtype)   # (I+H, 4*Hp)

    def pad_bias(b):
        return jnp.pad(b, (0, Hp - H))

    b_packed = jnp.concatenate(
        [pad_bias(bias[0:H]), pad_bias(bias[H:2 * H]),
         pad_bias(bias[2 * H:3 * H]), pad_bias(bias[2 * H:3 * H])]
    ).reshape(1, 4 * Hp).astype(jnp.float32)

    return {"w": w_packed, "b": b_packed, "H": H, "Hp": Hp, "I": input_size}


def gru_cell_forward(x, h_prev, params):
    """h_next = GRUCell(x, h_prev) using the packed params from prepare_gru_params."""
    B, I = x.shape
    H, Hp = params["H"], params["Hp"]
    assert h_prev.shape == (B, H)
    K = I + H
    mxu_dtype = params["w"].dtype

    # bf16 MXU operand: [x | h_prev].  h_prev is also passed in f32 for the combine.
    xh = jnp.concatenate([x, h_prev], axis=1).astype(mxu_dtype)   # (B, K)
    h_f32 = h_prev.astype(jnp.float32)

    # Batch tile: sublane-aligned & pipelined when B is large, otherwise one block.
    TB = min(B, 256) if (B % 8 == 0) else B
    grid = (pl.cdiv(B, TB),)

    kernel = functools.partial(_gru_cell_kernel, H=H, Hp=Hp)

    out = pl.pallas_call(
        kernel,
        out_shape=jax.ShapeDtypeStruct((B, H), jnp.float32),
        grid_spec=pltpu.PrefetchScalarGridSpec(
            num_scalar_prefetch=0,
            grid=grid,
            in_specs=[
                pl.BlockSpec((TB, K), lambda i: (i, 0)),        # [x|h] bf16 tile
                pl.BlockSpec((TB, H), lambda i: (i, 0)),        # h_prev f32 tile
                pl.BlockSpec((K, 4 * Hp), lambda i: (0, 0)),    # weights: resident
                pl.BlockSpec((1, 4 * Hp), lambda i: (0, 0)),    # bias: resident
            ],
            out_specs=pl.BlockSpec((TB, H), lambda i: (i, 0)),
        ),
        compiler_params=pltpu.CompilerParams(
            dimension_semantics=("parallel",)),
    )(xh, h_f32, params["w"], params["b"])
    return out.astype(x.dtype)


def gru_cell_reference(x, h_prev, W_ih, W_hh, bias, mxu_dtype=jnp.bfloat16):
    """Pure-JAX reference with the same interpretation and same bf16 MXU operands."""
    H = h_prev.shape[1]
    wih_t = W_ih.T.astype(mxu_dtype)
    whh_t = W_hh.T.astype(mxu_dtype)
    xh = jnp.concatenate([x, h_prev], axis=1).astype(mxu_dtype)
    w = jnp.concatenate([wih_t, whh_t], axis=0)                    # (I+H, 3H)
    gates = jnp.dot(xh, w, preferred_element_type=jnp.float32) + bias
    hh_n = jnp.dot(h_prev.astype(mxu_dtype), whh_t[:, 2 * H:3 * H],
                   preferred_element_type=jnp.float32) + bias[2 * H:3 * H]
    z = jax.nn.sigmoid(gates[:, 0:H])
    r = jax.nn.sigmoid(gates[:, H:2 * H])
    n = jnp.tanh(gates[:, 2 * H:3 * H] + r * hh_n)
    return n + z * (h_prev - n)


if __name__ == "__main__":
    B = 8            # batch
    INPUT_SIZE = 16  # input features
    HIDDEN = 32      # hidden size

    key = jax.random.PRNGKey(0)
    k_x, k_h, k_wih, k_whh, k_b = jax.random.split(key, 5)

    stdv = 1.0 / math.sqrt(HIDDEN)
    x = jax.random.normal(k_x, (B, INPUT_SIZE), dtype=jnp.float32)
    h_prev = jax.random.normal(k_h, (B, HIDDEN), dtype=jnp.float32)
    W_ih = jax.random.uniform(k_wih, (3 * HIDDEN, INPUT_SIZE),
                              minval=-stdv, maxval=stdv, dtype=jnp.float32)
    W_hh = jax.random.uniform(k_whh, (3 * HIDDEN, HIDDEN),
                              minval=-stdv, maxval=stdv, dtype=jnp.float32)
    bias = jax.random.uniform(k_b, (3 * HIDDEN,),
                              minval=-stdv, maxval=stdv, dtype=jnp.float32)

    params = prepare_gru_params(W_ih, W_hh, bias)        # done once, not per step
    h_next = gru_cell_forward(x, h_prev, params)
    jax.block_until_ready(h_next)

    ref = gru_cell_reference(x, h_prev, W_ih, W_hh, bias)
    assert h_next.shape == (B, HIDDEN)
    err = float(jnp.max(jnp.abs(h_next - ref)))
    assert jnp.allclose(h_next, ref, atol=1e-4, rtol=1e-4), f"max abs err {err}"

    print("KERNEL_OK")
</pallas_src>

<mosaic_0001>
module attributes {stable_mosaic.version = 11 : i64} {
  func.func @_gru_cell_kernel(%arg0: i32, %arg1: memref<8x48xbf16, #tpu.memory_space<vmem>>, %arg2: memref<8x32xf32, #tpu.memory_space<vmem>>, %arg3: memref<48x512xbf16, #tpu.memory_space<vmem>>, %arg4: memref<1x512xf32, #tpu.memory_space<vmem>>, %arg5: memref<8x32xf32, #tpu.memory_space<vmem>>) attributes {dimension_semantics = [#tpu.dimension_semantics<parallel>], iteration_bounds = array<i64: 1>, scalar_prefetch = 0 : i64, scratch_operands = 0 : i64, tpu.core_type = #tpu.core_type<tc>, window_params = [{transform_indices = @transform_0, window_bounds = array<i64: 8, 48>}, {transform_indices = @transform_1, window_bounds = array<i64: 8, 32>}, {pipeline_mode = #tpu.pipeline_mode<synchronous>, transform_indices = @transform_2, window_bounds = array<i64: 48, 512>}, {pipeline_mode = #tpu.pipeline_mode<synchronous>, transform_indices = @transform_3, window_bounds = array<i64: 1, 512>}, {transform_indices = @transform_4, window_bounds = array<i64: 8, 32>}]} {
    %c0 = arith.constant 0 : index
    %c0_0 = arith.constant 0 : index
    %0 = vector.load %arg1[%c0, %c0_0] : memref<8x48xbf16, #tpu.memory_space<vmem>>, vector<8x48xbf16>
    %c0_1 = arith.constant 0 : index
    %c0_2 = arith.constant 0 : index
    %1 = vector.load %arg3[%c0_1, %c0_2] : memref<48x512xbf16, #tpu.memory_space<vmem>>, vector<48x512xbf16>
    %cst = arith.constant dense<0.000000e+00> : vector<8x512xf32>
    %2 = tpu.matmul %0, %1, %cst {dimension_numbers = #tpu.dot_dimension_numbers<[1], [0], [0], [1], [0, 0, 1, 1], [], []>} : vector<8x48xbf16>, vector<48x512xbf16>, vector<8x512xf32> -> vector<8x512xf32>
    %c0_3 = arith.constant 0 : index
    %c0_4 = arith.constant 0 : index
    %3 = vector.load %arg4[%c0_3, %c0_4] : memref<1x512xf32, #tpu.memory_space<vmem>>, vector<1x512xf32>
    %4 = vector.broadcast %3 : vector<1x512xf32> to vector<8x512xf32>
    %5 = arith.addf %2, %4 : vector<8x512xf32>
    %6 = vector.extract_strided_slice %5 {offsets = [0, 0], sizes = [8, 32], strides = [1, 1]} : vector<8x512xf32> to vector<8x32xf32>
    %7 = arith.negf %6 : vector<8x32xf32>
    %8 = math.exp %7 : vector<8x32xf32>
    %cst_5 = arith.constant 1.000000e+00 : f32
    %9 = vector.broadcast %cst_5 : f32 to vector<8x32xf32>
    %10 = arith.addf %9, %8 : vector<8x32xf32>
    %11 = arith.divf %9, %10 : vector<8x32xf32>
    %12 = vector.extract_strided_slice %5 {offsets = [0, 128], sizes = [8, 32], strides = [1, 1]} : vector<8x512xf32> to vector<8x32xf32>
    %13 = arith.negf %12 : vector<8x32xf32>
    %14 = math.exp %13 : vector<8x32xf32>
    %cst_6 = arith.constant 1.000000e+00 : f32
    %15 = vector.broadcast %cst_6 : f32 to vector<8x32xf32>
    %16 = arith.addf %15, %14 : vector<8x32xf32>
    %17 = arith.divf %15, %16 : vector<8x32xf32>
    %18 = vector.extract_strided_slice %5 {offsets = [0, 256], sizes = [8, 32], strides = [1, 1]} : vector<8x512xf32> to vector<8x32xf32>
    %19 = vector.extract_strided_slice %5 {offsets = [0, 384], sizes = [8, 32], strides = [1, 1]} : vector<8x512xf32> to vector<8x32xf32>
    %20 = arith.mulf %17, %19 : vector<8x32xf32>
    %21 = arith.addf %18, %20 : vector<8x32xf32>
    %22 = math.tanh %21 : vector<8x32xf32>
    %c0_7 = arith.constant 0 : index
    %c0_8 = arith.constant 0 : index
    %23 = vector.load %arg2[%c0_7, %c0_8] : memref<8x32xf32, #tpu.memory_space<vmem>>, vector<8x32xf32>
    %24 = arith.subf %23, %22 : vector<8x32xf32>
    %25 = arith.mulf %11, %24 : vector<8x32xf32>
    %26 = arith.addf %22, %25 : vector<8x32xf32>
    %c0_9 = arith.constant 0 : index
    %c0_10 = arith.constant 0 : index
    %27 = vector.load %arg5[%c0_9, %c0_10] : memref<8x32xf32, #tpu.memory_space<vmem>>, vector<8x32xf32>
    tpu.vector_store %arg5[%c0_9, %c0_10], %26 {strides = array<i32>} : memref<8x32xf32, #tpu.memory_space<vmem>>, vector<8x32xf32>,
    return
  }
  func.func @transform_0(%arg0: i32) -> (i32, i32) {
    %c0_i32 = arith.constant 0 : i32
    %c0_i32_0 = arith.constant 0 : i32
    return %arg0, %c0_i32 : i32, i32
  }
  func.func @transform_1(%arg0: i32) -> (i32, i32) {
    %c0_i32 = arith.constant 0 : i32
    %c0_i32_0 = arith.constant 0 : i32
    return %arg0, %c0_i32 : i32, i32
  }
  func.func @transform_2(%arg0: i32) -> (i32, i32) {
    %c0_i32 = arith.constant 0 : i32
    %c0_i32_0 = arith.constant 0 : i32
    %c0_i32_1 = arith.constant 0 : i32
    return %c0_i32, %c0_i32_0 : i32, i32
  }
  func.func @transform_3(%arg0: i32) -> (i32, i32) {
    %c0_i32 = arith.constant 0 : i32
    %c0_i32_0 = arith.constant 0 : i32
    %c0_i32_1 = arith.constant 0 : i32
    return %c0_i32, %c0_i32_0 : i32, i32
  }
  func.func @transform_4(%arg0: i32) -> (i32, i32) {
    %c0_i32 = arith.constant 0 : i32
    %c0_i32_0 = arith.constant 0 : i32
    return %arg0, %c0_i32 : i32, i32
  }
}

</mosaic_0001>

<llo_original>
// kernel: tpu_custom_call.1
$region0: #{tpu_custom_call.1}
  #allocation0 [shape = 'u32[]', space=smem, size = 0x4, offset = 0x4, fixed_abs, tag = 'smem constant byte address 0x4 - core index']
  #allocation1 [shape = 'u32[144,128]{1,0:T(1,128)}', space=vmem, size = 0x12000, scoped, tag = 'internal scratch']
  %s0 = inlined_call_operand.hbm [shape: bf16[8,48], index: 0, kind: input, shape index: {}]
  %s1 = inlined_call_operand.hbm [shape: f32[8,32], index: 1, kind: input, shape index: {}]
  %s2 = inlined_call_operand.hbm [shape: bf16[48,512], index: 2, kind: input, shape index: {}]
  %s3 = inlined_call_operand.vmem [shape: f32[1,512], index: 3, kind: input, shape index: {}]
  %s4 = inlined_call_operand.hbm [shape: f32[8,32], index: 4, kind: output, shape index: {}]
  %s5 = sld [smem:[#allocation0]]
  $region38: #{tpu_custom_call.1} parent=0
    _
  %s7 = ssub.s32 1, %s5
  %s8 = scalar_select 0, %s7, %s5
  $region1: #{tpu_custom_call.1} parent=0
    #allocation2 [shape = 'u8[2048]{0}', space=vmem, size = 0x800, scoped, tag = 'input window, operand 0, single buffered']
    #allocation3 [shape = 's32[1]{0}', space=sflag, size = 0x4, scoped, tag = 'scoped memory for tpu_custom_call.1']
    #allocation4 [shape = 's32[1]{0}', space=sflag, size = 0x4, scoped, tag = 'scoped memory for tpu_custom_call.1']
    #allocation5 [shape = 'u8[4096]{0}', space=vmem, size = 0x1000, scoped, tag = 'input window, operand 1, single buffered']
    #allocation6 [shape = 's32[1]{0}', space=sflag, size = 0x4, scoped, tag = 'scoped memory for tpu_custom_call.1']
    #allocation7 [shape = 'u8[49152]{0}', space=vmem, size = 0xc000, scoped, tag = 'input window, operand 2, single buffered']
    #allocation8 [shape = 'u8[4096]{0}', space=vmem, size = 0x1000, scoped, tag = 'output window, operand 0, single buffered']
    %9 = vsyncpa [#allocation3], 0
    %10 = vsyncpa [#allocation6], 0
    %11 = vsyncpa [#allocation4], 0
    // Predicated region
    $region2: #{tpu_custom_call.1} parent=1 // pred_check
      _
    $region3: #{tpu_custom_call.1} parent=1 // pred_check_branch
      %13 = sbr.rel (0) target = $region5
    $region4: #{tpu_custom_call.1} parent=1 // pred_region
      %s15 = ssub.s32 64, 64
      %16 = vsyncadd [#allocation3], %s15
      %s18 = sshll.u32 [#allocation2], 4
      %s19 = int_to_ptr.vmem [resolvable:$true] %s18
      %21 = dma.hbm_to_vmem [thread:$0]  %s0, 64, %s19, [#allocation3]
    $region5: #{tpu_custom_call.1} parent=1 // pred_fallthru
      _
    // Predicated region
    $region6: #{tpu_custom_call.1} parent=1 // pred_check
      _
    $region7: #{tpu_custom_call.1} parent=1 // pred_check_branch
      %23 = sbr.rel (0) target = $region9
    $region8: #{tpu_custom_call.1} parent=1 // pred_region
      %s25 = ssub.s32 128, 128
      %26 = vsyncadd [#allocation6], %s25
      %s28 = sshll.u32 [#allocation5], 4
      %s29 = int_to_ptr.vmem [resolvable:$true] %s28
      %31 = dma.hbm_to_vmem [thread:$0]  %s1, 128, %s29, [#allocation6]
    $region9: #{tpu_custom_call.1} parent=1 // pred_fallthru
      _
    // Predicated region
    $region10: #{tpu_custom_call.1} parent=1 // pred_check
      _
    $region11: #{tpu_custom_call.1} parent=1 // pred_check_branch
      %33 = sbr.rel (0) target = $region13
    $region12: #{tpu_custom_call.1} parent=1 // pred_region
      %s35 = ssub.s32 1536, 1536
      %36 = vsyncadd [#allocation6], %s35
      %s37 = sshll.u32 [#allocation7], 4
      %s38 = int_to_ptr.vmem [resolvable:$true] %s37
      %43 = dma.hbm_to_vmem [thread:$0]  %s2, 1536, %s38, [#allocation6], 256, 256, 16
    $region13: #{tpu_custom_call.1} parent=1 // pred_fallthru
      _
    // Predicated region
    $region14: #{tpu_custom_call.1} parent=1 // pred_check
      _
    $region15: #{tpu_custom_call.1} parent=1 // pred_check_branch
      %45 = sbr.rel (0) target = $region17
    $region16: #{tpu_custom_call.1} parent=1 // pred_region
      _
    $region17: #{tpu_custom_call.1} parent=1 // pred_fallthru
      _
    // Predicated region
    $region18: #{tpu_custom_call.1} parent=1 // pred_check
      _
    $region19: #{tpu_custom_call.1} parent=1 // pred_check_branch
      %47 = sbr.rel (0) target = $region21
    $region20: #{tpu_custom_call.1} parent=1 // pred_region
      %48 = dma.done [#allocation3], 64
    $region21: #{tpu_custom_call.1} parent=1 // pred_fallthru
      _
    // Predicated region
    $region22: #{tpu_custom_call.1} parent=1 // pred_check
      _
    $region23: #{tpu_custom_call.1} parent=1 // pred_check_branch
      %50 = sbr.rel (0) target = $region25
    $region24: #{tpu_custom_call.1} parent=1 // pred_region
      %51 = dma.done [#allocation6], 128
    $region25: #{tpu_custom_call.1} parent=1 // pred_fallthru
      _
    // Predicated region
    $region26: #{tpu_custom_call.1} parent=1 // pred_check
      _
    $region27: #{tpu_custom_call.1} parent=1 // pred_check_branch
      %53 = sbr.rel (0) target = $region29
    $region28: #{tpu_custom_call.1} parent=1 // pred_region
      %54 = dma.done [#allocation6], 1536
    $region29: #{tpu_custom_call.1} parent=1 // pred_fallthru
      _
    %v56 = vld [vmem:[#allocation2] sm:$0xf]
    %v57 = vld [vmem:[#allocation7] sm:$0xff]
    %v58 = vld [vmem:[#allocation7 + $0x8] sm:$0xff]
    %v59 = vld [vmem:[#allocation7 + $0x10] sm:$0xff]
    %v60 = vld [vmem:[#allocation7 + $0x18] sm:$0xff]
    %v61 = vld [vmem:[#allocation7 + $0x20] sm:$0xff]
    %v62 = vld [vmem:[#allocation7 + $0x28] sm:$0xff]
    %v63 = vld [vmem:[#allocation7 + $0x30] sm:$0xff]
    %v64 = vld [vmem:[#allocation7 + $0x38] sm:$0xff]
    %v65 = vld [vmem:[#allocation7 + $0x40] sm:$0xff]
    %v66 = vld [vmem:[#allocation7 + $0x48] sm:$0xff]
    %v67 = vld [vmem:[#allocation7 + $0x50] sm:$0xff]
    %v68 = vld [vmem:[#allocation7 + $0x58] sm:$0xff]
    %v69 = vld [vmem:[%s3] sm:$0xf]
    %v71 = vlaneseq
    %v72 = vshrl.u32 %v71, 7
    %v73 = vsub.s32 0, %v72
    %v74 = vrot.slane %v69, %v73
    %v75 = vlaneseq
    %v76 = vshrl.u32 %v75, 7
    %v77 = vsub.s32 1, %v76
    %v78 = vrot.slane %v69, %v77
    %v79 = vlaneseq
    %v80 = vshrl.u32 %v79, 7
    %v81 = vsub.s32 2, %v80
    %v82 = vrot.slane %v69, %v81
    %v83 = vlaneseq
    %v84 = vshrl.u32 %v83, 7
    %v85 = vsub.s32 3, %v84
    %v86 = vrot.slane %v69, %v85
    %v103 = vunpack.c.l.b16 %v57
    %v104 = vunpack.c.h.b16 %v57
    %v105 = vunpack.c.l.b16 %v58
    %v106 = vunpack.c.h.b16 %v58
    %v107 = vunpack.c.l.b16 %v59
    %v108 = vunpack.c.h.b16 %v59
    %v109 = vunpack.c.l.b16 %v60
    %v110 = vunpack.c.h.b16 %v60
    %v111 = vunpack.c.l.b16 %v61
    %v112 = vunpack.c.h.b16 %v61
    %v113 = vunpack.c.l.b16 %v62
    %v114 = vunpack.c.h.b16 %v62
    %v115 = vunpack.c.l.b16 %v63
    %v116 = vunpack.c.h.b16 %v63
    %v117 = vunpack.c.l.b16 %v64
    %v118 = vunpack.c.h.b16 %v64
    %v119 = vunpack.c.l.b16 %v65
    %v120 = vunpack.c.h.b16 %v65
    %v121 = vunpack.c.l.b16 %v66
    %v122 = vunpack.c.h.b16 %v66
    %v123 = vunpack.c.l.b16 %v67
    %v124 = vunpack.c.h.b16 %v67
    %v125 = vunpack.c.l.b16 %v68
    %v126 = vunpack.c.h.b16 %v68
    %v127 = vpack.c.b16 %v107, %v103
    %v128 = vpack.c.b16 %v108, %v104
    %v129 = vpack.c.b16 %v109, %v105
    %v130 = vpack.c.b16 %v110, %v106
    %v131 = vpack.c.b16 %v115, %v111
    %v132 = vpack.c.b16 %v116, %v112
    %v133 = vpack.c.b16 %v117, %v113
    %v134 = vpack.c.b16 %v118, %v114
    %v135 = vpack.c.b16 %v123, %v119
    %v136 = vpack.c.b16 %v124, %v120
    %v137 = vpack.c.b16 %v125, %v121
    %v138 = vpack.c.b16 %v126, %v122
    %vm151 = vcmask 392192
    %v153 = vsel %vm151, %v56, 0
    %155 = vmatprep.subr.bf16.mxu0 %v128
    %156 = vmatpush1.bf16.msra.mxu0 %v127
    %157 = vmatprep.subr.bf16.mxu0 %v132
    %158 = vmatpush1.bf16.msra.mxu0 %v131
    %159 = vmatprep.subr.bf16.mxu0 %v136
    %160 = vmatpush1.bf16.msra.mxu0 %v135
    %161 = vmatprep.subr.bf16.mxu0 0
    %162 = vmatpush1.bf16.msra.mxu0 0
    %163 = vmatprep.subr.bf16.mxu0 0
    %164 = vmatpush1.bf16.msra.mxu0 0
    %165 = vmatprep.subr.bf16.mxu0 0
    %166 = vmatpush1.bf16.msra.mxu0 0
    %167 = vmatprep.subr.bf16.mxu0 0
    %168 = vmatpush1.bf16.msra.mxu0 0
    %169 = vmatprep.subr.bf16.mxu0 0
    %170 = vmatpush1.bf16.msra.mxu0 0
    %171 = vmatprep.subr.bf16.mxu0 0
    %172 = vmatpush1.bf16.msra.mxu0 0
    %173 = vmatprep.subr.bf16.mxu0 0
    %174 = vmatpush1.bf16.msra.mxu0 0
    %175 = vmatprep.subr.bf16.mxu0 0
    %176 = vmatpush1.bf16.msra.mxu0 0
    %177 = vmatprep.subr.bf16.mxu0 0
    %178 = vmatpush1.bf16.msra.mxu0 0
    %179 = vmatprep.subr.bf16.mxu0 0
    %180 = vmatpush1.bf16.msra.mxu0 0
    %181 = vmatprep.subr.bf16.mxu0 0
    %182 = vmatpush1.bf16.msra.mxu0 0
    %183 = vmatprep.subr.bf16.mxu0 0
    %184 = vmatpush1.bf16.msra.mxu0 0
    %185 = vmatprep.subr.bf16.mxu0 0
    %186 = vmatpush1.bf16.msra.mxu0 0
    %187 = vmatprep.mubr.bf16.mxu0 0
    %188 = vmatmul.mubr.bf16.gmra.mrb[0].mxu0 %v153
    %v189 = vpop.f32.mrb[0].mxu0
    %v190 = vadd.f32 %v74, %v189
    %v191 = vpop.f32.mrb[0].mxu0
    %v192 = vadd.f32 %v78, %v191
    %v193 = vpop.f32.mrb[0].mxu0
    %v194 = vpop.f32.mrb[0].mxu0
    %195 = vdwg.mxu0
    %196 = vmatprep.subr.bf16.mxu0 %v130
    %197 = vmatpush1.bf16.msra.mxu0 %v129
    %198 = vmatprep.subr.bf16.mxu0 %v134
    %199 = vmatpush1.bf16.msra.mxu0 %v133
    %200 = vmatprep.subr.bf16.mxu0 %v138
    %201 = vmatpush1.bf16.msra.mxu0 %v137
    %202 = vmatprep.subr.bf16.mxu0 0
    %203 = vmatpush1.bf16.msra.mxu0 0
    %204 = vmatprep.subr.bf16.mxu0 0
    %205 = vmatpush1.bf16.msra.mxu0 0
    %206 = vmatprep.subr.bf16.mxu0 0
    %207 = vmatpush1.bf16.msra.mxu0 0
    %208 = vmatprep.subr.bf16.mxu0 0
    %209 = vmatpush1.bf16.msra.mxu0 0
    %210 = vmatprep.subr.bf16.mxu0 0
    %211 = vmatpush1.bf16.msra.mxu0 0
    %212 = vmatprep.subr.bf16.mxu0 0
    %213 = vmatpush1.bf16.msra.mxu0 0
    %214 = vmatprep.subr.bf16.mxu0 0
    %215 = vmatpush1.bf16.msra.mxu0 0
    %216 = vmatprep.subr.bf16.mxu0 0
    %217 = vmatpush1.bf16.msra.mxu0 0
    %218 = vmatprep.subr.bf16.mxu0 0
    %219 = vmatpush1.bf16.msra.mxu0 0
    %220 = vmatprep.subr.bf16.mxu0 0
    %221 = vmatpush1.bf16.msra.mxu0 0
    %222 = vmatprep.subr.bf16.mxu0 0
    %223 = vmatpush1.bf16.msra.mxu0 0
    %224 = vmatprep.subr.bf16.mxu0 0
    %225 = vmatpush1.bf16.msra.mxu0 0
    %226 = vmatprep.subr.bf16.mxu0 0
    %227 = vmatpush1.bf16.msra.mxu0 0
    %228 = vmatprep.mubr.bf16.mxu0 0
    %229 = vmatmul.mubr.bf16.gmra.mrb[0].mxu0 %v153
    %v230 = vpop.f32.mrb[0].mxu0
    %v231 = vadd.f32 %v82, %v230
    %v232 = vpop.f32.mrb[0].mxu0
    %v233 = vadd.f32 %v86, %v232
    %v234 = vpop.f32.mrb[0].mxu0
    %v235 = vpop.f32.mrb[0].mxu0
    %236 = vdwg.mxu0
    %v237 = vxor.u32 %v190, 2147483648
    %v238 = vmul.f32 %v237, 1.442695
    %v239 = vpow.pop %v238
    %v240 = vadd.f32 %v239, 1.0
    %v241 = vrcp.pop %v240
    %v242 = vmul.f32 1.0, %v241
    %v243 = vxor.u32 %v192, 2147483648
    %v244 = vmul.f32 %v243, 1.442695
    %v245 = vpow.pop %v244
    %v246 = vadd.f32 %v245, 1.0
    %v247 = vrcp.pop %v246
    %v248 = vmul.f32 1.0, %v247
    %v249 = vmul.f32 %v248, %v233
    %v250 = vadd.f32 %v231, %v249
    %v251 = vtanh.pop %v250
    %v252 = vld [vmem:[#allocation5] sm:$0xff]
    %v253 = vsub.f32 %v252, %v251
    %v254 = vmul.f32 %v242, %v253
    %v255 = vadd.f32 %v251, %v254
    %vm256 = vcmask 261120
    %257 = vst.msk [vmem:[#allocation8] sm:$0xff] %vm256, %v255
    // Predicated region
    $region30: #{tpu_custom_call.1} parent=1 // pred_check
      _
    $region31: #{tpu_custom_call.1} parent=1 // pred_check_branch
      %259 = sbr.rel (0) target = $region33
    $region32: #{tpu_custom_call.1} parent=1 // pred_region
      %s261 = ssub.s32 128, 128
      %262 = vsyncadd [#allocation4], %s261
      %s264 = sshll.u32 [#allocation8], 4
      %s265 = int_to_ptr.vmem [resolvable:$true] %s264
      %267 = dma.vmem_to_hbm [thread:$0]  %s265, 128, %s4, [#allocation4]
    $region33: #{tpu_custom_call.1} parent=1 // pred_fallthru
      _
    // Predicated region
    $region34: #{tpu_custom_call.1} parent=1 // pred_check
      _
    $region35: #{tpu_custom_call.1} parent=1 // pred_check_branch
      %269 = sbr.rel (0) target = $region37
    $region36: #{tpu_custom_call.1} parent=1 // pred_region
      %270 = dma.done [#allocation4], 128
    $region37: #{tpu_custom_call.1} parent=1 // pred_fallthru
      _
    %271 = vsyncpa [#allocation3], 1
    %272 = vsyncpa [#allocation6], 1
    %273 = vsyncpa [#allocation4], 1

</llo_original>
